<compile_context>
chip_gen: v7x
topology: tpu7x:2x2x1
jax: 0.10.0
libtpu: 0.0.40
codegen_flags: <defaults>
</compile_context>

<pallas_src>
import functools

import jax
import jax.numpy as jnp
from jax.experimental import pallas as pl
from jax.experimental.pallas import tpu as pltpu


def _round_up(a, b):
    return (a + b - 1) // b * b


# --------------------------------------------------------------------------
# Per-generation tile / VMEM configuration.
# --------------------------------------------------------------------------
def _chip_config():
    kind = ""
    try:
        kind = jax.devices()[0].device_kind.lower()
    except Exception:
        pass
    if "7x" in kind or "v7" in kind:
        # v7x: 64 MiB physical VMEM per TC -> never request it all; 2 TCs/chip.
        return dict(tm=512, ti=256, vmem=56 * 1024 * 1024, two_cores=True)
    if "v6" in kind:
        # v6e: ~650 FLOP/B crossover -> big token tiles; 128 MiB physical VMEM.
        return dict(tm=1024, ti=512, vmem=100 * 1024 * 1024, two_cores=False)
    if "v5e" in kind or "v5 lite" in kind:
        return dict(tm=512, ti=512, vmem=96 * 1024 * 1024, two_cores=False)
    # Unknown (v4/v5p/interpret): conservative but still compute-friendly.
    return dict(tm=512, ti=512, vmem=96 * 1024 * 1024, two_cores=False)


# --------------------------------------------------------------------------
# One-time weight preparation (done at param-init time, NOT per forward).
# --------------------------------------------------------------------------
def prepare_llama_mlp_params(raw, *, beacon=True, ti_target=512):
    """Pre-layout weights for the fused kernel.

    raw: dict with transposed nn.Linear weights (in_features, out_features):
         gate_t/up_t: (H, I), down_t: (I, H), plus beacon_up_t/beacon_down_t
         when `beacon` is True.

    Returns a dict holding:
      gate_up: (W*Kb, H, 2*ti)  -- slice k of set w = [gate_k | up_k], contiguous
      down:    (W*Kb, ti, H)    -- slice k of set w, contiguous
    where W = 2 (ordinal, beacon) or 1, Kb = ceil(I/ti), and I is zero-padded to
    Kb*ti (zero columns/rows are exact no-ops for SwiGLU).
    """
    gate_t = raw["gate_t"]
    up_t = raw["up_t"]
    down_t = raw["down_t"]
    hidden, inter = gate_t.shape

    ti = min(ti_target, _round_up(inter, 128))
    ti = _round_up(ti, 128)
    inter_p = _round_up(inter, ti)
    kb = inter_p // ti

    def pad_cols(w):  # (H, I) -> (H, Ip)
        return w if inter_p == inter else jnp.pad(w, ((0, 0), (0, inter_p - inter)))

    def pad_rows(w):  # (I, H) -> (Ip, H)
        return w if inter_p == inter else jnp.pad(w, ((0, inter_p - inter), (0, 0)))

    def block_gate_up(g, u):
        # (H, Ip) -> (Kb, H, 2*ti); slice k holds [gate cols k*ti:(k+1)*ti | up cols ...]
        g = pad_cols(g).reshape(hidden, kb, ti).transpose(1, 0, 2)
        u = pad_cols(u).reshape(hidden, kb, ti).transpose(1, 0, 2)
        return jnp.concatenate([g, u], axis=-1)

    def block_down(d):
        # (Ip, H) -> (Kb, ti, H)
        return pad_rows(d).reshape(kb, ti, hidden)

    sets_gu = [block_gate_up(gate_t, up_t)]
    sets_dn = [block_down(down_t)]
    if beacon:
        sets_gu.append(block_gate_up(gate_t, raw["beacon_up_t"]))
        sets_dn.append(block_down(raw["beacon_down_t"]))

    gate_up = jnp.concatenate(sets_gu, axis=0) if len(sets_gu) > 1 else sets_gu[0]
    down = jnp.concatenate(sets_dn, axis=0) if len(sets_dn) > 1 else sets_dn[0]
    return {
        "gate_up": gate_up,
        "down": down,
        "ti": ti,
        "kb": kb,
        "hidden": hidden,
        "n_sets": 2 if beacon else 1,
    }


# --------------------------------------------------------------------------
# Kernel
# --------------------------------------------------------------------------
def _mlp_kernel(sel_ref, x_ref, wgu_ref, wd_ref, o_ref, acc_ref):
    """One (token-tile, intermediate-slice) step of the fused SwiGLU MLP.

    sel_ref : SMEM (n_token_tiles,) int32 — weight-set id per token tile
              (consumed by the index_maps; unused in the body).
    x_ref   : (TM, H)      activation tile (native dtype, e.g. bf16)
    wgu_ref : (H, 2*TI)    fused [gate | up/beacon_up] weight slice
    wd_ref  : (TI, H)      down / beacon_down weight slice
    o_ref   : (TM, H)      output tile
    acc_ref : VMEM (TM, H) f32 accumulator over the intermediate axis
    """
    k = pl.program_id(1)
    ti = wd_ref.shape[0]

    @pl.when(k == 0)
    def _():
        acc_ref[...] = jnp.zeros_like(acc_ref)

    x = x_ref[...]
    # Single MXU launch for gate+up, f32 accumulation.
    gu = jnp.dot(x, wgu_ref[...], preferred_element_type=jnp.float32)
    gate = gu[:, :ti]
    up = gu[:, ti:]
    # SiLU in f32 (EUP sigmoid + VPU mul); cast back to weight dtype for the MXU.
    hidden = (gate * jax.nn.sigmoid(gate)) * up
    acc_ref[...] += jnp.dot(hidden.astype(wd_ref.dtype), wd_ref[...],
                            preferred_element_type=jnp.float32)

    @pl.when(k == pl.num_programs(1) - 1)
    def _():
        o_ref[...] = acc_ref[...].astype(o_ref.dtype)


@functools.partial(jax.jit, static_argnames=("tm", "ti", "kb", "vmem_limit"))
def _fused_mlp(sel, x_pad, gate_up, down, *, tm, ti, kb, vmem_limit):
    """sel: (n_tiles,) i32; x_pad: (Mp, H); gate_up: (W*Kb, H, 2*ti); down: (W*Kb, ti, H)."""
    m_pad, hidden = x_pad.shape
    grid = (m_pad // tm, kb)

    return pl.pallas_call(
        _mlp_kernel,
        out_shape=jax.ShapeDtypeStruct((m_pad, hidden), x_pad.dtype),
        grid_spec=pltpu.PrefetchScalarGridSpec(
            num_scalar_prefetch=1,
            grid=grid,
            in_specs=[
                pl.BlockSpec((tm, hidden), lambda i, k, s: (i, 0)),            # x tile
                pl.BlockSpec((None, hidden, 2 * ti),
                             lambda i, k, s: (s[i] * kb + k, 0, 0)),            # fused gate|up slice
                pl.BlockSpec((None, ti, hidden),
                             lambda i, k, s: (s[i] * kb + k, 0, 0)),            # down slice
            ],
            out_specs=pl.BlockSpec((tm, hidden), lambda i, k, s: (i, 0)),
            scratch_shapes=[pltpu.VMEM((tm, hidden), jnp.float32)],
        ),
        compiler_params=pltpu.CompilerParams(
            dimension_semantics=("parallel", "arbitrary"),
            vmem_limit_bytes=vmem_limit,
        ),
    )(sel, x_pad, gate_up, down)


# --------------------------------------------------------------------------
# Wrapper: run a list of (M_seg, H) token slabs in ONE pallas_call.
# --------------------------------------------------------------------------
def _run_segments(segments, weight_ids, prepped, cfg):
    ti = prepped["ti"]
    kb = prepped["kb"]

    max_seg = max(s.shape[0] for s in segments)
    # bf16 packs 16 rows per vreg -> round tm to a multiple of 16.
    tm = min(cfg["tm"], _round_up(max(max_seg, 1), 16))
    tm = max(16, _round_up(tm, 16))
    # v7x: keep the "parallel" token-tile axis >= 2 so both TensorCores get work.
    if cfg.get("two_cores", False) and tm >= 32:
        n_tiles = sum(max(_round_up(s.shape[0], tm) // tm, 0) for s in segments)
        if n_tiles < 2:
            tm = max(16, _round_up(tm // 2, 16))

    # TODO(synk): replace the per-segment jnp.pad + post-hoc slicing with a
    # ragged-last-tile masked store (pl.cdiv grid + pltpu.store mask) to avoid
    # the extra activation copy and the mostly-padding beacon tile.
    padded, sel = [], []
    for seg, wid in zip(segments, weight_ids):
        m = seg.shape[0]
        mp = _round_up(m, tm)
        padded.append(seg if mp == m else jnp.pad(seg, ((0, mp - m), (0, 0))))
        sel.extend([wid] * (mp // tm))
    x_pad = padded[0] if len(padded) == 1 else jnp.concatenate(padded, axis=0)
    sel = jnp.asarray(sel, dtype=jnp.int32)

    out = _fused_mlp(sel, x_pad, prepped["gate_up"], prepped["down"],
                     tm=tm, ti=ti, kb=kb, vmem_limit=cfg["vmem"])

    results, off = [], 0
    for seg in segments:
        m = seg.shape[0]
        results.append(out[off:off + m])
        off += _round_up(m, tm)
    return results


def llama_mlp_forward(x, beacon_size, prepped, cfg=None):
    """x: (B, S, H). Mirrors LlamaMLP.forward (pretraining_tp == 1).

    `prepped` comes from prepare_llama_mlp_params (one-time weight layout)."""
    if cfg is None:
        cfg = _chip_config()
    B, S, H = x.shape

    if prepped["n_sets"] > 1 and beacon_size > 0:
        ordinal = x[:, : S - beacon_size].reshape(-1, H)
        beacon = x[:, S - beacon_size:].reshape(-1, H)
        ord_out, bcn_out = _run_segments([ordinal, beacon], [0, 1], prepped, cfg)
        ord_out = ord_out.reshape(B, S - beacon_size, H)
        bcn_out = bcn_out.reshape(B, beacon_size, H)
        return jnp.concatenate([ord_out, bcn_out], axis=1)
    else:
        (out,) = _run_segments([x.reshape(-1, H)], [0], prepped, cfg)
        return out.reshape(B, S, H)


# --------------------------------------------------------------------------
# Pure-JAX f32 reference matching the PyTorch forward.
# --------------------------------------------------------------------------
def _reference(x, beacon_size, raw, beacon_param=("mlp",)):
    x32 = x.astype(jnp.float32)
    gate_t = raw["gate_t"].astype(jnp.float32)

    def mlp(xs, wu, wd):
        g = xs @ gate_t
        u = xs @ wu.astype(jnp.float32)
        return (jax.nn.silu(g) * u) @ wd.astype(jnp.float32)

    S = x.shape[1]
    if "mlp" in beacon_param and beacon_size > 0:
        o = mlp(x32[:, : S - beacon_size], raw["up_t"], raw["down_t"])
        b = mlp(x32[:, S - beacon_size:], raw["beacon_up_t"], raw["beacon_down_t"])
        return jnp.concatenate([o, b], axis=1)
    return mlp(x32, raw["up_t"], raw["down_t"])


if __name__ == "__main__":
    # Small config consistent with LlamaMLP: hidden_size=128, intermediate_size=256,
    # hidden_act='silu', beacon_param=['mlp'], pretraining_tp=1.
    batch, seq = 2, 8
    hidden_size, intermediate_size = 128, 256
    beacon_size = 2
    dtype = jnp.bfloat16  # production path: bf16 operands, f32 accumulation

    key = jax.random.PRNGKey(0)
    kx, kg, ku, kd, kbu, kbd = jax.random.split(key, 6)
    scale = 0.02

    x = jax.random.normal(kx, (batch, seq, hidden_size), jnp.float32).astype(dtype)

    # nn.Linear weights are (out_features, in_features); we store transposed (in, out).
    raw_params = {
        "gate_t": (scale * jax.random.normal(
            kg, (hidden_size, intermediate_size), jnp.float32)).astype(dtype),
        "up_t": (scale * jax.random.normal(
            ku, (hidden_size, intermediate_size), jnp.float32)).astype(dtype),
        "down_t": (scale * jax.random.normal(
            kd, (intermediate_size, hidden_size), jnp.float32)).astype(dtype),
        # _init_beacon_proj would copy up/down into the beacon projections; here we
        # initialize them independently (as if post-training) to exercise the branch.
        "beacon_up_t": (scale * jax.random.normal(
            kbu, (hidden_size, intermediate_size), jnp.float32)).astype(dtype),
        "beacon_down_t": (scale * jax.random.normal(
            kbd, (intermediate_size, hidden_size), jnp.float32)).astype(dtype),
    }

    cfg = _chip_config()
    # One-time weight layout (stacking, gate/up fusion, I padding, k-blocking).
    prepped = prepare_llama_mlp_params(raw_params, beacon=True, ti_target=cfg["ti"])
    prepped = jax.tree_util.tree_map(
        lambda a: jax.block_until_ready(a) if isinstance(a, jax.Array) else a, prepped)

    # Beacon path.
    out = jax.block_until_ready(llama_mlp_forward(x, beacon_size, prepped, cfg))
    ref = _reference(x, beacon_size, raw_params)
    assert out.shape == (batch, seq, hidden_size)
    err = float(jnp.max(jnp.abs(out.astype(jnp.float32) - ref)))
    assert err < 1e-2, f"beacon path max-abs error {err}"

    # beacon_size == 0 path (ordinal weights only).
    out0 = jax.block_until_ready(llama_mlp_forward(x, 0, prepped, cfg))
    ref0 = _reference(x, 0, raw_params)
    err0 = float(jnp.max(jnp.abs(out0.astype(jnp.float32) - ref0)))
    assert err0 < 1e-2, f"no-beacon path max-abs error {err0}"

    print("KERNEL_OK")
</pallas_src>

<mosaic_0001>
module attributes {stable_mosaic.version = 11 : i64} {
  func.func @_mlp_kernel(%arg0: i32, %arg1: i32, %arg2: memref<2xi32, #tpu.memory_space<smem>>, %arg3: memref<16x128xbf16, #tpu.memory_space<vmem>>, %arg4: memref<1x128x512xbf16, #tpu.memory_space<vmem>>, %arg5: memref<1x256x128xbf16, #tpu.memory_space<vmem>>, %arg6: memref<16x128xbf16, #tpu.memory_space<vmem>>, %arg7: memref<16x128xf32, #tpu.memory_space<vmem>>) attributes {dimension_semantics = [#tpu.dimension_semantics<parallel>, #tpu.dimension_semantics<arbitrary>], iteration_bounds = array<i64: 2, 1>, scalar_prefetch = 1 : i64, scratch_operands = 1 : i64, tpu.core_type = #tpu.core_type<tc>, window_params = [{transform_indices = @transform_0, window_bounds = array<i64: 16, 128>}, {transform_indices = @transform_1, window_bounds = array<i64: 1, 128, 512>}, {transform_indices = @transform_2, window_bounds = array<i64: 1, 256, 128>}, {transform_indices = @transform_3, window_bounds = array<i64: 16, 128>}]} {
    %c0_i32 = arith.constant 0 : i32
    %0 = arith.cmpi eq, %arg1, %c0_i32 : i32
    %1 = arith.extui %0 : i1 to i32
    %c0_i32_0 = arith.constant 0 : i32
    %2 = arith.cmpi ne, %1, %c0_i32_0 : i32
    scf.if %2 {
      %cst_16 = arith.constant 0.000000e+00 : f32
      %26 = vector.broadcast %cst_16 : f32 to vector<16x128xf32>
      %c0_17 = arith.constant 0 : index
      %c0_18 = arith.constant 0 : index
      %27 = vector.load %arg7[%c0_17, %c0_18] : memref<16x128xf32, #tpu.memory_space<vmem>>, vector<16x128xf32>
      tpu.vector_store %arg7[%c0_17, %c0_18], %26 {strides = array<i32>} : memref<16x128xf32, #tpu.memory_space<vmem>>, vector<16x128xf32>,
    } else {
    }
    %c0 = arith.constant 0 : index
    %c0_1 = arith.constant 0 : index
    %3 = vector.load %arg3[%c0, %c0_1] : memref<16x128xbf16, #tpu.memory_space<vmem>>, vector<16x128xbf16>
    %c0_2 = arith.constant 0 : index
    %c0_3 = arith.constant 0 : index
    %c0_4 = arith.constant 0 : index
    %4 = vector.load %arg4[%c0_2, %c0_3, %c0_4] : memref<1x128x512xbf16, #tpu.memory_space<vmem>>, vector<1x128x512xbf16>
    %5 = vector.shape_cast %4 : vector<1x128x512xbf16> to vector<128x512xbf16>
    %cst = arith.constant dense<0.000000e+00> : vector<16x512xf32>
    %6 = tpu.matmul %3, %5, %cst {dimension_numbers = #tpu.dot_dimension_numbers<[1], [0], [0], [1], [0, 0, 1, 1], [], []>} : vector<16x128xbf16>, vector<128x512xbf16>, vector<16x512xf32> -> vector<16x512xf32>
    %7 = vector.extract_strided_slice %6 {offsets = [0, 0], sizes = [16, 256], strides = [1, 1]} : vector<16x512xf32> to vector<16x256xf32>
    %8 = vector.extract_strided_slice %6 {offsets = [0, 256], sizes = [16, 256], strides = [1, 1]} : vector<16x512xf32> to vector<16x256xf32>
    %9 = arith.negf %7 : vector<16x256xf32>
    %10 = math.exp %9 : vector<16x256xf32>
    %cst_5 = arith.constant 1.000000e+00 : f32
    %11 = vector.broadcast %cst_5 : f32 to vector<16x256xf32>
    %12 = arith.addf %11, %10 : vector<16x256xf32>
    %13 = arith.divf %11, %12 : vector<16x256xf32>
    %14 = arith.mulf %7, %13 : vector<16x256xf32>
    %15 = arith.mulf %14, %8 : vector<16x256xf32>
    %c0_6 = arith.constant 0 : index
    %c0_7 = arith.constant 0 : index
    %16 = vector.load %arg7[%c0_6, %c0_7] : memref<16x128xf32, #tpu.memory_space<vmem>>, vector<16x128xf32>
    %17 = arith.truncf %15 : vector<16x256xf32> to vector<16x256xbf16>
    %c0_8 = arith.constant 0 : index
    %c0_9 = arith.constant 0 : index
    %c0_10 = arith.constant 0 : index
    %18 = vector.load %arg5[%c0_8, %c0_9, %c0_10] : memref<1x256x128xbf16, #tpu.memory_space<vmem>>, vector<1x256x128xbf16>
    %19 = vector.shape_cast %18 : vector<1x256x128xbf16> to vector<256x128xbf16>
    %cst_11 = arith.constant dense<0.000000e+00> : vector<16x128xf32>
    %20 = tpu.matmul %17, %19, %cst_11 {dimension_numbers = #tpu.dot_dimension_numbers<[1], [0], [0], [1], [0, 0, 1, 1], [], []>} : vector<16x256xbf16>, vector<256x128xbf16>, vector<16x128xf32> -> vector<16x128xf32>
    %21 = arith.addf %16, %20 : vector<16x128xf32>
    %c0_12 = arith.constant 0 : index
    %c0_13 = arith.constant 0 : index
    %22 = vector.load %arg7[%c0_12, %c0_13] : memref<16x128xf32, #tpu.memory_space<vmem>>, vector<16x128xf32>
    tpu.vector_store %arg7[%c0_12, %c0_13], %21 {strides = array<i32>} : memref<16x128xf32, #tpu.memory_space<vmem>>, vector<16x128xf32>,
    %c0_i32_14 = arith.constant 0 : i32
    %23 = arith.cmpi eq, %arg1, %c0_i32_14 : i32
    %24 = arith.extui %23 : i1 to i32
    %c0_i32_15 = arith.constant 0 : i32
    %25 = arith.cmpi ne, %24, %c0_i32_15 : i32
    scf.if %25 {
      %c0_16 = arith.constant 0 : index
      %c0_17 = arith.constant 0 : index
      %26 = vector.load %arg7[%c0_16, %c0_17] : memref<16x128xf32, #tpu.memory_space<vmem>>, vector<16x128xf32>
      %27 = arith.truncf %26 : vector<16x128xf32> to vector<16x128xbf16>
      %c0_18 = arith.constant 0 : index
      %c0_19 = arith.constant 0 : index
      %28 = vector.load %arg6[%c0_18, %c0_19] : memref<16x128xbf16, #tpu.memory_space<vmem>>, vector<16x128xbf16>
      tpu.vector_store %arg6[%c0_18, %c0_19], %27 {strides = array<i32>} : memref<16x128xbf16, #tpu.memory_space<vmem>>, vector<16x128xbf16>,
    } else {
    }
    return
  }
  func.func @transform_0(%arg0: i32, %arg1: i32, %arg2: memref<2xi32, #tpu.memory_space<smem>>) -> (i32, i32) {
    %c0_i32 = arith.constant 0 : i32
    %c0_i32_0 = arith.constant 0 : i32
    return %arg0, %c0_i32 : i32, i32
  }
  func.func @transform_1(%arg0: i32, %arg1: i32, %arg2: memref<2xi32, #tpu.memory_space<smem>>) -> (i32, i32, i32) {
    %0 = arith.index_cast %arg0 : i32 to index
    %1 = memref.load %arg2[%0] : memref<2xi32, #tpu.memory_space<smem>>
    %c1_i32 = arith.constant 1 : i32
    %2 = arith.muli %1, %c1_i32 : i32
    %3 = arith.addi %2, %arg1 : i32
    %c0_i32 = arith.constant 0 : i32
    %c0_i32_0 = arith.constant 0 : i32
    %c0_i32_1 = arith.constant 0 : i32
    return %3, %c0_i32, %c0_i32_0 : i32, i32, i32
  }
  func.func @transform_2(%arg0: i32, %arg1: i32, %arg2: memref<2xi32, #tpu.memory_space<smem>>) -> (i32, i32, i32) {
    %0 = arith.index_cast %arg0 : i32 to index
    %1 = memref.load %arg2[%0] : memref<2xi32, #tpu.memory_space<smem>>
    %c1_i32 = arith.constant 1 : i32
    %2 = arith.muli %1, %c1_i32 : i32
    %3 = arith.addi %2, %arg1 : i32
    %c0_i32 = arith.constant 0 : i32
    %c0_i32_0 = arith.constant 0 : i32
    %c0_i32_1 = arith.constant 0 : i32
    return %3, %c0_i32, %c0_i32_0 : i32, i32, i32
  }
  func.func @transform_3(%arg0: i32, %arg1: i32, %arg2: memref<2xi32, #tpu.memory_space<smem>>) -> (i32, i32) {
    %c0_i32 = arith.constant 0 : i32
    %c0_i32_0 = arith.constant 0 : i32
    return %arg0, %c0_i32 : i32, i32
  }
}

</mosaic_0001>

<llo_original>
// kernel: _fused_mlp.1
$region0: #{_fused_mlp.1}
  #allocation0 [shape = 'u32[]', space=smem, size = 0x4, offset = 0x4, fixed_abs, tag = 'smem constant byte address 0x4 - core index']
  #allocation1 [shape = 'u32[144,128]{1,0:T(1,128)}', space=vmem, size = 0x12000, scoped, tag = 'internal scratch']
  #allocation2 [shape = 'f32[16,128]{1,0:T(8,128)}', space=vmem, size = 0x2000, scoped, tag = 'scratch operand']
  #allocation3 [shape = 's32[1]{0}', space=sflag, size = 0x4, scoped, tag = 'scoped memory for _fused_mlp.1']
  #allocation4 [shape = 'u8[512]{0}', space=smem, size = 0x200, scoped, tag = 'prefetched SMEM operand 0']
  %s0 = inlined_call_operand.hbm [shape: s32[2], index: 0, kind: input, shape index: {}]
  %s1 = inlined_call_operand.hbm [shape: bf16[32,128], index: 1, kind: input, shape index: {}]
  %s2 = inlined_call_operand.hbm [shape: bf16[2,128,512], index: 2, kind: input, shape index: {}]
  %s3 = inlined_call_operand.hbm [shape: bf16[2,256,128], index: 3, kind: input, shape index: {}]
  %s4 = inlined_call_operand.hbm [shape: bf16[32,128], index: 4, kind: output, shape index: {}]
  %s5 = sld [smem:[#allocation0]]
  $region65: #{_fused_mlp.1} parent=0
    _
  %s7 = ssub.s32 1, %s5
  %s8 = scalar_select 0, %s7, %s5
  %10 = dma.hbm_to_smem %s0, 16, [#allocation4], [#allocation3]
  %11 = dma.done [#allocation3], 16
  %12 = sfence
  $region1: #{_fused_mlp.1} parent=0
    #allocation5 [shape = 'u8[8192]{0}', space=vmem, size = 0x2000, scoped, tag = 'input window, operand 1']
    #allocation6 [shape = 's32[2]{0}', space=sflag, size = 0x8, scoped, tag = 'scoped memory for _fused_mlp.1']
    #allocation7 [shape = 's32[2]{0}', space=sflag, size = 0x8, scoped, tag = 'scoped memory for _fused_mlp.1']
    #allocation8 [shape = 'u8[262144]{0}', space=vmem, size = 0x40000, scoped, tag = 'input window, operand 2']
    #allocation9 [shape = 's32[2]{0}', space=sflag, size = 0x8, scoped, tag = 'scoped memory for _fused_mlp.1']
    #allocation10 [shape = 'u8[131072]{0}', space=vmem, size = 0x20000, scoped, tag = 'input window, operand 3']
    #allocation11 [shape = 'u8[8192]{0}', space=vmem, size = 0x2000, scoped, tag = 'output window, operand 0']
    %13 = vsyncpa [#allocation6], 0
    %s14 = scalar_lea.sflag [#allocation6], 1
    %15 = vsyncpa %s14, 0
    %16 = vsyncpa [#allocation9], 0
    %s17 = scalar_lea.sflag [#allocation9], 1
    %18 = vsyncpa %s17, 0
    %19 = vsyncpa [#allocation7], 0
    %s20 = scalar_lea.sflag [#allocation7], 1
    %21 = vsyncpa %s20, 0
    loop: start=0, step=1, limit=4
    $region2: #{_fused_mlp.1} parent=1 // loop_pre_header
      _
    $region3: #{_fused_mlp.1} parent=1 // loop_header
      %s23 = sphi 0, %s27
      %p24 = scmp.ge.s32.totalorder %s23, 4
      %s30 = sphi 0, %s42
      %s31 = sphi 0, %s38
      %s32 = sphi 0, %s30
      %s33 = sphi 0, %s31
      %s34 = sphi 0, %s32
      %s35 = sphi 0, %s33
      %s45 = sphi 0, %s47
      %s48 = sphi 0, %s45
      %s49 = sphi 0, %s48
      %s65 = sphi 0, %s49
      %s75 = sphi 0, %s77
      %s78 = sphi 0, %s75
      %s79 = sphi 0, %s78
      %s95 = sphi 0, %s79
      %s105 = sphi 0, %s107
      %s108 = sphi 0, %s105
      %s109 = sphi 0, %s108
      %s125 = sphi 0, %s109
      %s131 = sphi 0, %s133
      %s134 = sphi 0, %s131
      %s135 = sphi 0, %s134
      %s151 = sphi 0, %s135
    $region4: #{_fused_mlp.1} parent=1 // loop_header_branch
      %26 = sbr.rel (%p24) target = $region8
    $region5: #{_fused_mlp.1} parent=1 // loop_body
      %s28 = ssub.s32 %s23, 1
      %s29 = ssub.s32 %s23, 2
      %s36 = sadd.s32 1, %s31
      %p37 = scmp.ge.s32.totalorder %s36, 1
      %s38 = scalar_select %p37, 0, %s36
      %s39 = sadd.s32 1, %s30
      %s40 = scalar_select %p37, %s39, %s30
      %p41 = scmp.ge.s32.totalorder %s40, 2
      %s42 = scalar_select %p41, 0, %s40
      %s43 = ssub.s32 %s30, %s42
      %p44 = scmp.eq.s32.totalorder %s43, 0
      %s46 = sadd.s32 %s45, 1
      %s47 = scalar_select %p44, %s45, %s46
      %p50 = pneg %p44
      %p51 = scmp.eq.s32.totalorder %s23, 1
      %p52 = por %p50, %p51
      %p53 = scmp.ne.s32.totalorder %s45, %s48
      %p54 = scmp.eq.s32.totalorder %s23, 0
      %p55 = por %p53, %p54
      %p56 = scmp.ne.s32.totalorder %s45, %s48
      %p57 = scmp.eq.s32.totalorder %s28, 1
      %p58 = por %p56, %p57
      %p59 = scmp.ne.s32.totalorder %s48, %s49
      %p60 = scmp.eq.s32.totalorder %s28, 0
      %p61 = por %p59, %p60
      %p62 = scmp.ne.s32.totalorder %s48, %s49
      %p63 = scmp.eq.s32.totalorder %s29, 1
      %p64 = por %p62, %p63
      %p66 = scmp.ne.s32.totalorder %s49, %s65
      %p67 = scmp.eq.s32.totalorder %s29, 0
      %p68 = por %p66, %p67
      %s69 = sld [smem:[#allocation4 + %s30]]
      %s70 = sadd.s32 %s69, %s31
      %s71 = sld [smem:[#allocation4 + %s42]]
      %s72 = sadd.s32 %s71, %s38
      %s73 = ssub.s32 %s70, %s72
      %p74 = scmp.eq.s32.totalorder %s73, 0
      %s76 = sadd.s32 %s75, 1
      %s77 = scalar_select %p74, %s75, %s76
      %p80 = pneg %p74
      %p81 = scmp.eq.s32.totalorder %s23, 1
      %p82 = por %p80, %p81
      %p83 = scmp.ne.s32.totalorder %s75, %s78
      %p84 = scmp.eq.s32.totalorder %s23, 0
      %p85 = por %p83, %p84
      %p86 = scmp.ne.s32.totalorder %s75, %s78
      %p87 = scmp.eq.s32.totalorder %s28, 1
      %p88 = por %p86, %p87
      %p89 = scmp.ne.s32.totalorder %s78, %s79
      %p90 = scmp.eq.s32.totalorder %s28, 0
      %p91 = por %p89, %p90
      %p92 = scmp.ne.s32.totalorder %s78, %s79
      %p93 = scmp.eq.s32.totalorder %s29, 1
      %p94 = por %p92, %p93
      %p96 = scmp.ne.s32.totalorder %s79, %s95
      %p97 = scmp.eq.s32.totalorder %s29, 0
      %p98 = por %p96, %p97
      %s99 = sld [smem:[#allocation4 + %s30]]
      %s100 = sadd.s32 %s99, %s31
      %s101 = sld [smem:[#allocation4 + %s42]]
      %s102 = sadd.s32 %s101, %s38
      %s103 = ssub.s32 %s100, %s102
      %p104 = scmp.eq.s32.totalorder %s103, 0
      %s106 = sadd.s32 %s105, 1
      %s107 = scalar_select %p104, %s105, %s106
      %p110 = pneg %p104
      %p111 = scmp.eq.s32.totalorder %s23, 1
      %p112 = por %p110, %p111
      %p113 = scmp.ne.s32.totalorder %s105, %s108
      %p114 = scmp.eq.s32.totalorder %s23, 0
      %p115 = por %p113, %p114
      %p116 = scmp.ne.s32.totalorder %s105, %s108
      %p117 = scmp.eq.s32.totalorder %s28, 1
      %p118 = por %p116, %p117
      %p119 = scmp.ne.s32.totalorder %s108, %s109
      %p120 = scmp.eq.s32.totalorder %s28, 0
      %p121 = por %p119, %p120
      %p122 = scmp.ne.s32.totalorder %s108, %s109
      %p123 = scmp.eq.s32.totalorder %s29, 1
      %p124 = por %p122, %p123
      %p126 = scmp.ne.s32.totalorder %s109, %s125
      %p127 = scmp.eq.s32.totalorder %s29, 0
      %p128 = por %p126, %p127
      %s129 = ssub.s32 %s30, %s42
      %p130 = scmp.eq.s32.totalorder %s129, 0
      %s132 = sadd.s32 %s131, 1
      %s133 = scalar_select %p130, %s131, %s132
      %p136 = pneg %p130
      %p137 = scmp.eq.s32.totalorder %s23, 1
      %p138 = por %p136, %p137
      %p139 = scmp.ne.s32.totalorder %s131, %s134
      %p140 = scmp.eq.s32.totalorder %s23, 0
      %p141 = por %p139, %p140
      %p142 = scmp.ne.s32.totalorder %s131, %s134
      %p143 = scmp.eq.s32.totalorder %s28, 1
      %p144 = por %p142, %p143
      %p145 = scmp.ne.s32.totalorder %s134, %s135
      %p146 = scmp.eq.s32.totalorder %s28, 0
      %p147 = por %p145, %p146
      %p148 = scmp.ne.s32.totalorder %s134, %s135
      %p149 = scmp.eq.s32.totalorder %s29, 1
      %p150 = por %p148, %p149
      %p152 = scmp.ne.s32.totalorder %s135, %s151
      %p153 = scmp.eq.s32.totalorder %s29, 0
      %p154 = por %p152, %p153
      %p155 = scmp.le.s32.totalorder 1, %s23
      %p156 = scmp.lt.s32.totalorder %s23, 3
      %p157 = pnand %p155, %p156
      %p158 = pneg %p157
      // Predicated region
      $region9: #{_fused_mlp.1} parent=5 // pred_check
        _
      $region10: #{_fused_mlp.1} parent=5 // pred_check_branch
        %160 = sbr.rel (%p157) target = $region12
      $region11: #{_fused_mlp.1} parent=5 // pred_region
        %s161 = ssub.s32 %s23, 1
      $region12: #{_fused_mlp.1} parent=5 // pred_fallthru
        _
      %p162 = scmp.lt.s32.totalorder %s23, 2
      // Predicated region
      $region13: #{_fused_mlp.1} parent=5 // pred_check
        %p163 = pneg %p162
      $region14: #{_fused_mlp.1} parent=5 // pred_check_branch
        %165 = sbr.rel (%p163) target = $region16
      $region15: #{_fused_mlp.1} parent=5 // pred_region
        // Predicated region
        $region17: #{_fused_mlp.1} parent=15 // pred_check
          %p166 = pneg %p55
        $region18: #{_fused_mlp.1} parent=15 // pred_check_branch
          %168 = sbr.rel (%p166) target = $region20
        $region19: #{_fused_mlp.1} parent=15 // pred_region
          %s169 = sand.u32 %s45, 1
          %s170 = scalar_lea.sflag [#allocation6], %s169
          %s171 = sand.u32 %s45, 1
          %s172 = smul.addr %s171, 8
          %s173 = scalar_lea.vmem [#allocation5], %s172
          %s174 = smul.u32 2, %s30
          %s176 = ssub.s32 128, 128
          %177 = vsyncadd %s170, %s176
          %s178 = smul.addr %s174, 64
          %s179 = scalar_lea.hbm %s1, %s178
          %s180 = sshll.u32 %s173, 4
          %s181 = int_to_ptr.vmem [resolvable:$true] %s180
          %186 = dma.hbm_to_vmem [thread:$0]  %s179, 128, %s181, %s170, 64, 64, 4
        $region20: #{_fused_mlp.1} parent=15 // pred_fallthru
          _
        // Predicated region
        $region21: #{_fused_mlp.1} parent=15 // pred_check
          %p187 = pneg %p85
        $region22: #{_fused_mlp.1} parent=15 // pred_check_branch
          %189 = sbr.rel (%p187) target = $region24
        $region23: #{_fused_mlp.1} parent=15 // pred_region
          %s190 = sand.u32 %s23, 1
          %s191 = scalar_lea.sflag [#allocation9], %s190
          %s192 = sand.u32 %s75, 1
          %s193 = smul.addr %s192, 256
          %s194 = scalar_lea.vmem [#allocation8], %s193
          %s195 = sld [smem:[#allocation4 + %s30]]
          %s196 = sadd.s32 %s195, %s31
          %s198 = ssub.s32 4096, 4096
          %199 = vsyncadd %s191, %s198
          %s200 = smul.addr %s196, 64
          %s201 = smul.addr %s200, 64
          %s202 = scalar_lea.hbm %s2, %s201
          %s203 = sshll.u32 %s194, 4
          %s204 = int_to_ptr.vmem [resolvable:$true] %s203
          %209 = dma.hbm_to_vmem [thread:$0]  %s202, 4096, %s204, %s191, 256, 256, 16
        $region24: #{_fused_mlp.1} parent=15 // pred_fallthru
          _
        // Predicated region
        $region25: #{_fused_mlp.1} parent=15 // pred_check
          %p210 = pneg %p115
        $region26: #{_fused_mlp.1} parent=15 // pred_check_branch
          %212 = sbr.rel (%p210) target = $region28
        $region27: #{_fused_mlp.1} parent=15 // pred_region
          %s213 = sand.u32 %s23, 1
          %s214 = scalar_lea.sflag [#allocation9], %s213
          %s215 = sand.u32 %s105, 1
          %s216 = smul.addr %s215, 128
          %s217 = scalar_lea.vmem [#allocation10], %s216
          %s218 = sld [smem:[#allocation4 + %s30]]
          %s219 = sadd.s32 %s218, %s31
          %s221 = ssub.s32 2048, 2048
          %222 = vsyncadd %s214, %s221
          %s223 = smul.addr %s219, 32
          %s224 = smul.addr %s223, 64
          %s225 = scalar_lea.hbm %s3, %s224
          %s226 = sshll.u32 %s217, 4
          %s227 = int_to_ptr.vmem [resolvable:$true] %s226
          %232 = dma.hbm_to_vmem [thread:$0]  %s225, 2048, %s227, %s214, 64, 64, 4
        $region28: #{_fused_mlp.1} parent=15 // pred_fallthru
          _
      $region16: #{_fused_mlp.1} parent=5 // pred_fallthru
        _
      %p233 = scmp.le.s32.totalorder 1, %s23
      %p234 = scmp.lt.s32.totalorder %s23, 3
      %p235 = pnand %p233, %p234
      %p236 = pneg %p235
      // Predicated region
      $region29: #{_fused_mlp.1} parent=5 // pred_check
        _
      $region30: #{_fused_mlp.1} parent=5 // pred_check_branch
        %238 = sbr.rel (%p235) target = $region32
      $region31: #{_fused_mlp.1} parent=5 // pred_region
        %s239 = ssub.s32 %s23, 1
        %s240 = sand.u32 %s48, 1
        %s241 = scalar_lea.sflag [#allocation6], %s240
        %s242 = sand.u32 %s48, 1
        %s243 = smul.addr %s242, 8
        %s244 = scalar_lea.vmem [#allocation5], %s243
        // Predicated region
        $region33: #{_fused_mlp.1} parent=31 // pred_check
          %p245 = pneg %p61
        $region34: #{_fused_mlp.1} parent=31 // pred_check_branch
          %247 = sbr.rel (%p245) target = $region36
        $region35: #{_fused_mlp.1} parent=31 // pred_region
          %248 = dma.done %s241, 128
        $region36: #{_fused_mlp.1} parent=31 // pred_fallthru
          _
        %s249 = sand.u32 %s28, 1
        %s250 = scalar_lea.sflag [#allocation9], %s249
        %s251 = sand.u32 %s78, 1
        %s252 = smul.addr %s251, 256
        %s253 = scalar_lea.vmem [#allocation8], %s252
        // Predicated region
        $region37: #{_fused_mlp.1} parent=31 // pred_check
          %p254 = pneg %p91
        $region38: #{_fused_mlp.1} parent=31 // pred_check_branch
          %256 = sbr.rel (%p254) target = $region40
        $region39: #{_fused_mlp.1} parent=31 // pred_region
          %257 = dma.done %s250, 4096
        $region40: #{_fused_mlp.1} parent=31 // pred_fallthru
          _
        %s258 = sand.u32 %s28, 1
        %s259 = scalar_lea.sflag [#allocation9], %s258
        %s260 = sand.u32 %s108, 1
        %s261 = smul.addr %s260, 128
        %s262 = scalar_lea.vmem [#allocation10], %s261
        // Predicated region
        $region41: #{_fused_mlp.1} parent=31 // pred_check
          %p263 = pneg %p121
        $region42: #{_fused_mlp.1} parent=31 // pred_check_branch
          %265 = sbr.rel (%p263) target = $region44
        $region43: #{_fused_mlp.1} parent=31 // pred_region
          %266 = dma.done %s259, 2048
        $region44: #{_fused_mlp.1} parent=31 // pred_fallthru
          _
        %s267 = sand.u32 %s48, 1
        %s268 = scalar_lea.sflag [#allocation6], %s267
        %s269 = sand.u32 %s48, 1
        %s270 = smul.addr %s269, 8
        %s271 = scalar_lea.vmem [#allocation5], %s270
        %p272 = pneg %p61
        %p273 = pneg %p58
        %s274 = sand.u32 %s28, 1
        %s275 = scalar_lea.sflag [#allocation9], %s274
        %s276 = sand.u32 %s78, 1
        %s277 = smul.addr %s276, 256
        %s278 = scalar_lea.vmem [#allocation8], %s277
        %p279 = pneg %p91
        %p280 = pneg %p88
        %s281 = sand.u32 %s28, 1
        %s282 = scalar_lea.sflag [#allocation9], %s281
        %s283 = sand.u32 %s108, 1
        %s284 = smul.addr %s283, 128
        %s285 = scalar_lea.vmem [#allocation10], %s284
        %p286 = pneg %p121
        %p287 = pneg %p118
        %p288 = pneg %p147
        %p289 = pneg %p144
        %s290 = sand.u32 %s134, 1
        %s291 = scalar_lea.sflag [#allocation7], %s290
        %s292 = sand.u32 %s134, 1
        %s293 = smul.addr %s292, 8
        %s294 = scalar_lea.vmem [#allocation11], %s293
        %s295 = smul.u32 2, %s32
        %s296 = sld [smem:[#allocation4 + %s32]]
        %s297 = sadd.s32 %s296, %s33
        %s298 = sld [smem:[#allocation4 + %s32]]
        %s299 = sadd.s32 %s298, %s33
        %s300 = smul.u32 2, %s32
        %p302 = scmp.eq.s32.totalorder %s33, 0
        // Predicated region
        $region45: #{_fused_mlp.1} parent=31 // pred_check
          %p303 = pneg %p302
        $region46: #{_fused_mlp.1} parent=31 // pred_check_branch
          %305 = sbr.rel (%p303) target = $region48
        $region47: #{_fused_mlp.1} parent=31 // pred_region
          %306 = vst [vmem:[#allocation2] sm:$0xff] 0.0
          %307 = vst [vmem:[#allocation2 + $0x8] sm:$0xff] 0.0
        $region48: #{_fused_mlp.1} parent=31 // pred_fallthru
          _
        %v308 = vld [vmem:[%s244] sm:$0xf]
        %v309 = vld [vmem:[%s244 + $0x4] sm:$0xf]
        %v310 = vld [vmem:[%s253] sm:$0xff]
        %v311 = vld [vmem:[%s253 + $0x8] sm:$0xff]
        %v312 = vld [vmem:[%s253 + $0x10] sm:$0xff]
        %v313 = vld [vmem:[%s253 + $0x18] sm:$0xff]
        %v314 = vld [vmem:[%s253 + $0x20] sm:$0xff]
        %v315 = vld [vmem:[%s253 + $0x28] sm:$0xff]
        %v316 = vld [vmem:[%s253 + $0x30] sm:$0xff]
        %v317 = vld [vmem:[%s253 + $0x38] sm:$0xff]
        %v318 = vld [vmem:[%s253 + $0x40] sm:$0xff]
        %v319 = vld [vmem:[%s253 + $0x48] sm:$0xff]
        %v320 = vld [vmem:[%s253 + $0x50] sm:$0xff]
        %v321 = vld [vmem:[%s253 + $0x58] sm:$0xff]
        %v322 = vld [vmem:[%s253 + $0x60] sm:$0xff]
        %v323 = vld [vmem:[%s253 + $0x68] sm:$0xff]
        %v324 = vld [vmem:[%s253 + $0x70] sm:$0xff]
        %v325 = vld [vmem:[%s253 + $0x78] sm:$0xff]
        %v326 = vld [vmem:[%s253 + $0x80] sm:$0xff]
        %v327 = vld [vmem:[%s253 + $0x88] sm:$0xff]
        %v328 = vld [vmem:[%s253 + $0x90] sm:$0xff]
        %v329 = vld [vmem:[%s253 + $0x98] sm:$0xff]
        %v330 = vld [vmem:[%s253 + $0xa0] sm:$0xff]
        %v331 = vld [vmem:[%s253 + $0xa8] sm:$0xff]
        %v332 = vld [vmem:[%s253 + $0xb0] sm:$0xff]
        %v333 = vld [vmem:[%s253 + $0xb8] sm:$0xff]
        %v334 = vld [vmem:[%s253 + $0xc0] sm:$0xff]
        %v335 = vld [vmem:[%s253 + $0xc8] sm:$0xff]
        %v336 = vld [vmem:[%s253 + $0xd0] sm:$0xff]
        %v337 = vld [vmem:[%s253 + $0xd8] sm:$0xff]
        %v338 = vld [vmem:[%s253 + $0xe0] sm:$0xff]
        %v339 = vld [vmem:[%s253 + $0xe8] sm:$0xff]
        %v340 = vld [vmem:[%s253 + $0xf0] sm:$0xff]
        %v341 = vld [vmem:[%s253 + $0xf8] sm:$0xff]
        %v344 = vunpack.c.l.b16 %v308
        %v345 = vunpack.c.l.b16 %v309
        %v346 = vpack.c.b16 %v345, %v344
        %v380 = vunpack.c.l.b16 %v310
        %v381 = vunpack.c.h.b16 %v310
        %v382 = vunpack.c.l.b16 %v311
        %v383 = vunpack.c.h.b16 %v311
        %v384 = vunpack.c.l.b16 %v312
        %v385 = vunpack.c.h.b16 %v312
        %v386 = vunpack.c.l.b16 %v313
        %v387 = vunpack.c.h.b16 %v313
        %v388 = vunpack.c.l.b16 %v314
        %v389 = vunpack.c.h.b16 %v314
        %v390 = vunpack.c.l.b16 %v315
        %v391 = vunpack.c.h.b16 %v315
        %v392 = vunpack.c.l.b16 %v316
        %v393 = vunpack.c.h.b16 %v316
        %v394 = vunpack.c.l.b16 %v317
        %v395 = vunpack.c.h.b16 %v317
        %v396 = vunpack.c.l.b16 %v318
        %v397 = vunpack.c.h.b16 %v318
        %v398 = vunpack.c.l.b16 %v319
        %v399 = vunpack.c.h.b16 %v319
        %v400 = vunpack.c.l.b16 %v320
        %v401 = vunpack.c.h.b16 %v320
        %v402 = vunpack.c.l.b16 %v321
        %v403 = vunpack.c.h.b16 %v321
        %v404 = vunpack.c.l.b16 %v322
        %v405 = vunpack.c.h.b16 %v322
        %v406 = vunpack.c.l.b16 %v323
        %v407 = vunpack.c.h.b16 %v323
        %v408 = vunpack.c.l.b16 %v324
        %v409 = vunpack.c.h.b16 %v324
        %v410 = vunpack.c.l.b16 %v325
        %v411 = vunpack.c.h.b16 %v325
        %v412 = vunpack.c.l.b16 %v326
        %v413 = vunpack.c.h.b16 %v326
        %v414 = vunpack.c.l.b16 %v327
        %v415 = vunpack.c.h.b16 %v327
        %v416 = vunpack.c.l.b16 %v328
        %v417 = vunpack.c.h.b16 %v328
        %v418 = vunpack.c.l.b16 %v329
        %v419 = vunpack.c.h.b16 %v329
        %v420 = vunpack.c.l.b16 %v330
        %v421 = vunpack.c.h.b16 %v330
        %v422 = vunpack.c.l.b16 %v331
        %v423 = vunpack.c.h.b16 %v331
        %v424 = vunpack.c.l.b16 %v332
        %v425 = vunpack.c.h.b16 %v332
        %v426 = vunpack.c.l.b16 %v333
        %v427 = vunpack.c.h.b16 %v333
        %v428 = vunpack.c.l.b16 %v334
        %v429 = vunpack.c.h.b16 %v334
        %v430 = vunpack.c.l.b16 %v335
        %v431 = vunpack.c.h.b16 %v335
        %v432 = vunpack.c.l.b16 %v336
        %v433 = vunpack.c.h.b16 %v336
        %v434 = vunpack.c.l.b16 %v337
        %v435 = vunpack.c.h.b16 %v337
        %v436 = vunpack.c.l.b16 %v338
        %v437 = vunpack.c.h.b16 %v338
        %v438 = vunpack.c.l.b16 %v339
        %v439 = vunpack.c.h.b16 %v339
        %v440 = vunpack.c.l.b16 %v340
        %v441 = vunpack.c.h.b16 %v340
        %v442 = vunpack.c.l.b16 %v341
        %v443 = vunpack.c.h.b16 %v341
        %v444 = vpack.c.b16 %v384, %v380
        %v445 = vpack.c.b16 %v385, %v381
        %v446 = vpack.c.b16 %v386, %v382
        %v447 = vpack.c.b16 %v387, %v383
        %v448 = vpack.c.b16 %v392, %v388
        %v449 = vpack.c.b16 %v393, %v389
        %v450 = vpack.c.b16 %v394, %v390
        %v451 = vpack.c.b16 %v395, %v391
        %v452 = vpack.c.b16 %v400, %v396
        %v453 = vpack.c.b16 %v401, %v397
        %v454 = vpack.c.b16 %v402, %v398
        %v455 = vpack.c.b16 %v403, %v399
        %v456 = vpack.c.b16 %v408, %v404
        %v457 = vpack.c.b16 %v409, %v405
        %v458 = vpack.c.b16 %v410, %v406
        %v459 = vpack.c.b16 %v411, %v407
        %v460 = vpack.c.b16 %v416, %v412
        %v461 = vpack.c.b16 %v417, %v413
        %v462 = vpack.c.b16 %v418, %v414
        %v463 = vpack.c.b16 %v419, %v415
        %v464 = vpack.c.b16 %v424, %v420
        %v465 = vpack.c.b16 %v425, %v421
        %v466 = vpack.c.b16 %v426, %v422
        %v467 = vpack.c.b16 %v427, %v423
        %v468 = vpack.c.b16 %v432, %v428
        %v469 = vpack.c.b16 %v433, %v429
        %v470 = vpack.c.b16 %v434, %v430
        %v471 = vpack.c.b16 %v435, %v431
        %v472 = vpack.c.b16 %v440, %v436
        %v473 = vpack.c.b16 %v441, %v437
        %v474 = vpack.c.b16 %v442, %v438
        %v475 = vpack.c.b16 %v443, %v439
        %508 = vmatprep.subr.bf16.mxu0 %v445
        %509 = vmatpush1.bf16.msra.mxu0 %v444
        %510 = vmatprep.subr.bf16.mxu0 %v449
        %511 = vmatpush1.bf16.msra.mxu0 %v448
        %512 = vmatprep.subr.bf16.mxu0 %v453
        %513 = vmatpush1.bf16.msra.mxu0 %v452
        %514 = vmatprep.subr.bf16.mxu0 %v457
        %515 = vmatpush1.bf16.msra.mxu0 %v456
        %516 = vmatprep.subr.bf16.mxu0 %v461
        %517 = vmatpush1.bf16.msra.mxu0 %v460
        %518 = vmatprep.subr.bf16.mxu0 %v465
        %519 = vmatpush1.bf16.msra.mxu0 %v464
        %520 = vmatprep.subr.bf16.mxu0 %v469
        %521 = vmatpush1.bf16.msra.mxu0 %v468
        %522 = vmatprep.subr.bf16.mxu0 %v473
        %523 = vmatpush1.bf16.msra.mxu0 %v472
        %524 = vmatprep.subr.bf16.mxu0 0
        %525 = vmatpush1.bf16.msra.mxu0 0
        %526 = vmatprep.subr.bf16.mxu0 0
        %527 = vmatpush1.bf16.msra.mxu0 0
        %528 = vmatprep.subr.bf16.mxu0 0
        %529 = vmatpush1.bf16.msra.mxu0 0
        %530 = vmatprep.subr.bf16.mxu0 0
        %531 = vmatpush1.bf16.msra.mxu0 0
        %532 = vmatprep.subr.bf16.mxu0 0
        %533 = vmatpush1.bf16.msra.mxu0 0
        %534 = vmatprep.subr.bf16.mxu0 0
        %535 = vmatpush1.bf16.msra.mxu0 0
        %536 = vmatprep.subr.bf16.mxu0 0
        %537 = vmatpush1.bf16.msra.mxu0 0
        %538 = vmatprep.subr.bf16.mxu0 0
        %539 = vmatpush1.bf16.msra.mxu0 0
        %540 = vmatprep.mubr.bf16.mxu0 0
        %541 = vmatmul.mubr.bf16.gmra.mrb[0].mxu0 %v346
        %v542 = vpop.f32.mrb[0].mxu0
        %v543 = vadd.f32 0.0, %v542
        %v544 = vpop.f32.mrb[0].mxu0
        %v545 = vadd.f32 0.0, %v544
        %v546 = vpop.f32.mrb[0].mxu0
        %v547 = vadd.f32 0.0, %v546
        %v548 = vpop.f32.mrb[0].mxu0
        %v549 = vadd.f32 0.0, %v548
        %550 = vdwg.mxu0
        %551 = vmatprep.subr.bf16.mxu0 %v447
        %552 = vmatpush1.bf16.msra.mxu0 %v446
        %553 = vmatprep.subr.bf16.mxu0 %v451
        %554 = vmatpush1.bf16.msra.mxu0 %v450
        %555 = vmatprep.subr.bf16.mxu0 %v455
        %556 = vmatpush1.bf16.msra.mxu0 %v454
        %557 = vmatprep.subr.bf16.mxu0 %v459
        %558 = vmatpush1.bf16.msra.mxu0 %v458
        %559 = vmatprep.subr.bf16.mxu0 %v463
        %560 = vmatpush1.bf16.msra.mxu0 %v462
        %561 = vmatprep.subr.bf16.mxu0 %v467
        %562 = vmatpush1.bf16.msra.mxu0 %v466
        %563 = vmatprep.subr.bf16.mxu0 %v471
        %564 = vmatpush1.bf16.msra.mxu0 %v470
        %565 = vmatprep.subr.bf16.mxu0 %v475
        %566 = vmatpush1.bf16.msra.mxu0 %v474
        %567 = vmatprep.subr.bf16.mxu0 0
        %568 = vmatpush1.bf16.msra.mxu0 0
        %569 = vmatprep.subr.bf16.mxu0 0
        %570 = vmatpush1.bf16.msra.mxu0 0
        %571 = vmatprep.subr.bf16.mxu0 0
        %572 = vmatpush1.bf16.msra.mxu0 0
        %573 = vmatprep.subr.bf16.mxu0 0
        %574 = vmatpush1.bf16.msra.mxu0 0
        %575 = vmatprep.subr.bf16.mxu0 0
        %576 = vmatpush1.bf16.msra.mxu0 0
        %577 = vmatprep.subr.bf16.mxu0 0
        %578 = vmatpush1.bf16.msra.mxu0 0
        %579 = vmatprep.subr.bf16.mxu0 0
        %580 = vmatpush1.bf16.msra.mxu0 0
        %581 = vmatprep.subr.bf16.mxu0 0
        %582 = vmatpush1.bf16.msra.mxu0 0
        %583 = vmatprep.mubr.bf16.mxu0 0
        %584 = vmatmul.mubr.bf16.gmra.mrb[0].mxu0 %v346
        %v585 = vpop.f32.mrb[0].mxu0
        %v586 = vadd.f32 0.0, %v585
        %v587 = vpop.f32.mrb[0].mxu0
        %v588 = vadd.f32 0.0, %v587
        %v589 = vpop.f32.mrb[0].mxu0
        %v590 = vadd.f32 0.0, %v589
        %v591 = vpop.f32.mrb[0].mxu0
        %v592 = vadd.f32 0.0, %v591
        %593 = vdwg.mxu0
        %v594 = vxor.u32 %v543, 2147483648
        %v595 = vxor.u32 %v545, 2147483648
        %v596 = vxor.u32 %v547, 2147483648
        %v597 = vxor.u32 %v549, 2147483648
        %v598 = vmul.f32 %v594, 1.442695
        %v599 = vpow.pop %v598
        %v600 = vmul.f32 %v595, 1.442695
        %v601 = vpow.pop %v600
        %v602 = vmul.f32 %v596, 1.442695
        %v603 = vpow.pop %v602
        %v604 = vmul.f32 %v597, 1.442695
        %v605 = vpow.pop %v604
        %v606 = vadd.f32 %v599, 1.0
        %v607 = vadd.f32 %v601, 1.0
        %v608 = vadd.f32 %v603, 1.0
        %v609 = vadd.f32 %v605, 1.0
        %v610 = vrcp.pop %v606
        %v611 = vmul.f32 1.0, %v610
        %v612 = vrcp.pop %v607
        %v613 = vmul.f32 1.0, %v612
        %v614 = vrcp.pop %v608
        %v615 = vmul.f32 1.0, %v614
        %v616 = vrcp.pop %v609
        %v617 = vmul.f32 1.0, %v616
        %v618 = vmul.f32 %v543, %v611
        %v619 = vmul.f32 %v545, %v613
        %v620 = vmul.f32 %v547, %v615
        %v621 = vmul.f32 %v549, %v617
        %v622 = vmul.f32 %v618, %v586
        %v623 = vmul.f32 %v619, %v588
        %v624 = vmul.f32 %v620, %v590
        %v625 = vmul.f32 %v621, %v592
        %v626 = vld [vmem:[#allocation2] sm:$0xff]
        %v627 = vld [vmem:[#allocation2 + $0x8] sm:$0xff]
        %v628 = vpack.c.bf16 %v624, %v622
        %v629 = vpack.c.bf16 %v625, %v623
        %v630 = vld [vmem:[%s262] sm:$0xf]
        %v631 = vld [vmem:[%s262 + $0x4] sm:$0xf]
        %v632 = vld [vmem:[%s262 + $0x8] sm:$0xf]
        %v633 = vld [vmem:[%s262 + $0xc] sm:$0xf]
        %v634 = vld [vmem:[%s262 + $0x10] sm:$0xf]
        %v635 = vld [vmem:[%s262 + $0x14] sm:$0xf]
        %v636 = vld [vmem:[%s262 + $0x18] sm:$0xf]
        %v637 = vld [vmem:[%s262 + $0x1c] sm:$0xf]
        %v638 = vld [vmem:[%s262 + $0x20] sm:$0xf]
        %v639 = vld [vmem:[%s262 + $0x24] sm:$0xf]
        %v640 = vld [vmem:[%s262 + $0x28] sm:$0xf]
        %v641 = vld [vmem:[%s262 + $0x2c] sm:$0xf]
        %v642 = vld [vmem:[%s262 + $0x30] sm:$0xf]
        %v643 = vld [vmem:[%s262 + $0x34] sm:$0xf]
        %v644 = vld [vmem:[%s262 + $0x38] sm:$0xf]
        %v645 = vld [vmem:[%s262 + $0x3c] sm:$0xf]
        %v646 = vld [vmem:[%s262 + $0x40] sm:$0xf]
        %v647 = vld [vmem:[%s262 + $0x44] sm:$0xf]
        %v648 = vld [vmem:[%s262 + $0x48] sm:$0xf]
        %v649 = vld [vmem:[%s262 + $0x4c] sm:$0xf]
        %v650 = vld [vmem:[%s262 + $0x50] sm:$0xf]
        %v651 = vld [vmem:[%s262 + $0x54] sm:$0xf]
        %v652 = vld [vmem:[%s262 + $0x58] sm:$0xf]
        %v653 = vld [vmem:[%s262 + $0x5c] sm:$0xf]
        %v654 = vld [vmem:[%s262 + $0x60] sm:$0xf]
        %v655 = vld [vmem:[%s262 + $0x64] sm:$0xf]
        %v656 = vld [vmem:[%s262 + $0x68] sm:$0xf]
        %v657 = vld [vmem:[%s262 + $0x6c] sm:$0xf]
        %v658 = vld [vmem:[%s262 + $0x70] sm:$0xf]
        %v659 = vld [vmem:[%s262 + $0x74] sm:$0xf]
        %v660 = vld [vmem:[%s262 + $0x78] sm:$0xf]
        %v661 = vld [vmem:[%s262 + $0x7c] sm:$0xf]
        %v694 = vunpack.c.l.b16 %v630
        %v695 = vunpack.c.l.b16 %v631
        %v696 = vunpack.c.l.b16 %v632
        %v697 = vunpack.c.l.b16 %v633
        %v698 = vunpack.c.l.b16 %v634
        %v699 = vunpack.c.l.b16 %v635
        %v700 = vunpack.c.l.b16 %v636
        %v701 = vunpack.c.l.b16 %v637
        %v702 = vunpack.c.l.b16 %v638
        %v703 = vunpack.c.l.b16 %v639
        %v704 = vunpack.c.l.b16 %v640
        %v705 = vunpack.c.l.b16 %v641
        %v706 = vunpack.c.l.b16 %v642
        %v707 = vunpack.c.l.b16 %v643
        %v708 = vunpack.c.l.b16 %v644
        %v709 = vunpack.c.l.b16 %v645
        %v710 = vunpack.c.l.b16 %v646
        %v711 = vunpack.c.l.b16 %v647
        %v712 = vunpack.c.l.b16 %v648
        %v713 = vunpack.c.l.b16 %v649
        %v714 = vunpack.c.l.b16 %v650
        %v715 = vunpack.c.l.b16 %v651
        %v716 = vunpack.c.l.b16 %v652
        %v717 = vunpack.c.l.b16 %v653
        %v718 = vunpack.c.l.b16 %v654
        %v719 = vunpack.c.l.b16 %v655
        %v720 = vunpack.c.l.b16 %v656
        %v721 = vunpack.c.l.b16 %v657
        %v722 = vunpack.c.l.b16 %v658
        %v723 = vunpack.c.l.b16 %v659
        %v724 = vunpack.c.l.b16 %v660
        %v725 = vunpack.c.l.b16 %v661
        %v726 = vpack.c.b16 %v695, %v694
        %v727 = vpack.c.b16 %v697, %v696
        %v728 = vpack.c.b16 %v699, %v698
        %v729 = vpack.c.b16 %v701, %v700
        %v730 = vpack.c.b16 %v703, %v702
        %v731 = vpack.c.b16 %v705, %v704
        %v732 = vpack.c.b16 %v707, %v706
        %v733 = vpack.c.b16 %v709, %v708
        %v734 = vpack.c.b16 %v711, %v710
        %v735 = vpack.c.b16 %v713, %v712
        %v736 = vpack.c.b16 %v715, %v714
        %v737 = vpack.c.b16 %v717, %v716
        %v738 = vpack.c.b16 %v719, %v718
        %v739 = vpack.c.b16 %v721, %v720
        %v740 = vpack.c.b16 %v723, %v722
        %v741 = vpack.c.b16 %v725, %v724
        %758 = vmatprep.subr.bf16.mxu0 0
        %759 = vmatpush1.bf16.msra.mxu0 %v726
        %760 = vmatprep.subr.bf16.mxu0 0
        %761 = vmatpush1.bf16.msra.mxu0 %v727
        %762 = vmatprep.subr.bf16.mxu0 0
        %763 = vmatpush1.bf16.msra.mxu0 %v728
        %764 = vmatprep.subr.bf16.mxu0 0
        %765 = vmatpush1.bf16.msra.mxu0 %v729
        %766 = vmatprep.subr.bf16.mxu0 0
        %767 = vmatpush1.bf16.msra.mxu0 %v730
        %768 = vmatprep.subr.bf16.mxu0 0
        %769 = vmatpush1.bf16.msra.mxu0 %v731
        %770 = vmatprep.subr.bf16.mxu0 0
        %771 = vmatpush1.bf16.msra.mxu0 %v732
        %772 = vmatprep.subr.bf16.mxu0 0
        %773 = vmatpush1.bf16.msra.mxu0 %v733
        %774 = vmatprep.subr.bf16.mxu0 0
        %775 = vmatpush1.bf16.msra.mxu0 %v734
        %776 = vmatprep.subr.bf16.mxu0 0
        %777 = vmatpush1.bf16.msra.mxu0 %v735
        %778 = vmatprep.subr.bf16.mxu0 0
        %779 = vmatpush1.bf16.msra.mxu0 %v736
        %780 = vmatprep.subr.bf16.mxu0 0
        %781 = vmatpush1.bf16.msra.mxu0 %v737
        %782 = vmatprep.subr.bf16.mxu0 0
        %783 = vmatpush1.bf16.msra.mxu0 %v738
        %784 = vmatprep.subr.bf16.mxu0 0
        %785 = vmatpush1.bf16.msra.mxu0 %v739
        %786 = vmatprep.subr.bf16.mxu0 0
        %787 = vmatpush1.bf16.msra.mxu0 %v740
        %788 = vmatprep.subr.bf16.mxu0 0
        %789 = vmatpush1.bf16.msra.mxu0 %v741
        %790 = vmatprep.mubr.bf16.mxu0 %v629
        %791 = vmatmul.mubr.bf16.gmra.mrb[0].mxu0 %v628
        %v792 = vpop.f32.mrb[0].mxu0
        %v793 = vadd.f32 0.0, %v792
        %v794 = vpop.f32.mrb[0].mxu0
        %v795 = vpop.f32.mrb[0].mxu0
        %v796 = vadd.f32 0.0, %v795
        %v797 = vpop.f32.mrb[0].mxu0
        %798 = vdwg.mxu0
        %v799 = vadd.f32 %v626, %v793
        %v800 = vadd.f32 %v627, %v796
        %801 = vst [vmem:[#allocation2] sm:$0xff] %v799
        %802 = vst [vmem:[#allocation2 + $0x8] sm:$0xff] %v800
        // Predicated region
        $region49: #{_fused_mlp.1} parent=31 // pred_check
          %p803 = pneg %p302
        $region50: #{_fused_mlp.1} parent=31 // pred_check_branch
          %805 = sbr.rel (%p803) target = $region52
        $region51: #{_fused_mlp.1} parent=31 // pred_region
          %v806 = vld [vmem:[#allocation2] sm:$0xff]
          %v807 = vld [vmem:[#allocation2 + $0x8] sm:$0xff]
          %v808 = vpack.c.bf16 %v807, %v806
          %v810 = vunpack.c.l.b16 %v808
          %v811 = vunpack.c.h.b16 %v808
          %v812 = vpack.c.b16 %v810, %v810
          %v813 = vpack.c.b16 %v811, %v811
          %816 = vst [vmem:[%s294] sm:$0xf] %v812
          %817 = vst [vmem:[%s294 + $0x4] sm:$0xf] %v813
        $region52: #{_fused_mlp.1} parent=31 // pred_fallthru
          _
        %s818 = sand.u32 %s134, 1
        %s819 = scalar_lea.sflag [#allocation7], %s818
        %s820 = sand.u32 %s134, 1
        %s821 = smul.addr %s820, 8
        %s822 = scalar_lea.vmem [#allocation11], %s821
        // Predicated region
        $region53: #{_fused_mlp.1} parent=31 // pred_check
          %p823 = pneg %p144
        $region54: #{_fused_mlp.1} parent=31 // pred_check_branch
          %825 = sbr.rel (%p823) target = $region56
        $region55: #{_fused_mlp.1} parent=31 // pred_region
          %s826 = smul.u32 2, %s32
          %s828 = ssub.s32 128, 128
          %829 = vsyncadd %s819, %s828
          %s830 = smul.addr %s826, 64
          %s831 = scalar_lea.hbm %s4, %s830
          %s832 = sshll.u32 %s822, 4
          %s833 = int_to_ptr.vmem [resolvable:$true] %s832
          %838 = dma.vmem_to_hbm [thread:$0]  %s833, 128, %s831, %s819, 64, 64, 4
        $region56: #{_fused_mlp.1} parent=31 // pred_fallthru
          _
      $region32: #{_fused_mlp.1} parent=5 // pred_fallthru
        _
      %p839 = scmp.le.s32.totalorder 2, %s23
      // Predicated region
      $region57: #{_fused_mlp.1} parent=5 // pred_check
        %p840 = pneg %p839
      $region58: #{_fused_mlp.1} parent=5 // pred_check_branch
        %842 = sbr.rel (%p840) target = $region60
      $region59: #{_fused_mlp.1} parent=5 // pred_region
        %s843 = ssub.s32 %s23, 2
        // Predicated region
        $region61: #{_fused_mlp.1} parent=59 // pred_check
          %p844 = pneg %p150
        $region62: #{_fused_mlp.1} parent=59 // pred_check_branch
          %846 = sbr.rel (%p844) target = $region64
        $region63: #{_fused_mlp.1} parent=59 // pred_region
          %s847 = sand.u32 %s135, 1
          %s848 = scalar_lea.sflag [#allocation7], %s847
          %s849 = sand.u32 %s135, 1
          %s850 = smul.addr %s849, 8
          %s851 = scalar_lea.vmem [#allocation11], %s850
          %852 = dma.done %s848, 128
        $region64: #{_fused_mlp.1} parent=59 // pred_fallthru
          _
      $region60: #{_fused_mlp.1} parent=5 // pred_fallthru
        _
    $region6: #{_fused_mlp.1} parent=1 // loop_footer
      %s27 = sadd.s32 1, %s23
    $region7: #{_fused_mlp.1} parent=1 // loop_footer_branch
      %22 = sbr.rel target = $region3
    $region8: #{_fused_mlp.1} parent=1 // loop_exit
      _
    %853 = vsyncpa [#allocation6], 1
    %s854 = scalar_lea.sflag [#allocation6], 1
    %855 = vsyncpa %s854, 1
    %856 = vsyncpa [#allocation9], 1
    %s857 = scalar_lea.sflag [#allocation9], 1
    %858 = vsyncpa %s857, 1
    %859 = vsyncpa [#allocation7], 1
    %s860 = scalar_lea.sflag [#allocation7], 1
    %861 = vsyncpa %s860, 1

</llo_original>
